<compile_context>
chip_gen: v7x
topology: tpu7x:2x2x1
jax: 0.10.0
libtpu: 0.0.40
codegen_flags: <defaults>
</compile_context>

<pallas_src>
import functools

import jax
import jax.numpy as jnp
from jax.experimental import pallas as pl
from jax.experimental.pallas import tpu as pltpu

NEG_SLOPE = 0.01  # F.leaky_relu default negative_slope


def _round_up(n, m):
    return ((n + m - 1) // m) * m


def _choose_tile_b(B, *, max_tile=4096, n_cores=2):
    """Batch tile sized FROM B: bounded padding waste, >= 2*n_cores grid steps for
    large B (v7x megacore), capped at max_tile rows (per-step VMEM stays small)."""
    B8 = _round_up(max(B, 1), 8)
    min_steps = n_cores * 2 if B8 >= 8 * n_cores * 2 else 1
    n_steps = max(min_steps, pl.cdiv(B8, max_tile))
    return _round_up(pl.cdiv(B8, n_steps), 8)


def hlgauss_kernel(x_ref, w1_ref, b1_ref, w2_ref, b2_ref, w3_ref, b3_ref, o_ref,
                   *, bf16_epilogue=False):
    # x_ref:  (TB, 1)  f32      w1_ref: (1, W)  f32     b1_ref: (1, W)  f32
    # w2_ref: (W, W)   bf16     b2_ref: (1, W)  f32
    # w3_ref: (W, Np)  bf16     b3_ref: (1, Np) f32     o_ref:  (TB, Np)
    x = x_ref[...]                                          # (TB, 1) f32

    # Layer 1: Linear(1, W) == broadcasted mul-add on the VPU, then LeakyReLU
    # (max(x, slope*x) is valid for 0 < slope < 1).
    h = x * w1_ref[...] + b1_ref[...]                       # (TB, W) f32
    h = jnp.maximum(h, NEG_SLOPE * h)

    # Layer 2: Linear(W, W) on the MXU (bf16 operands, f32 accumulation).
    h = jnp.dot(h.astype(jnp.bfloat16), w2_ref[...],
                preferred_element_type=jnp.float32)         # (TB, W) f32

    if bf16_epilogue:
        # v6e/v7x only (bf16 VALU): bias + LeakyReLU in bf16, no extra cast op.
        h = h.astype(jnp.bfloat16) + b2_ref[...].astype(jnp.bfloat16)
        h = jnp.maximum(h, NEG_SLOPE * h)                   # bf16
    else:
        h = h + b2_ref[...]
        h = jnp.maximum(h, NEG_SLOPE * h)                   # f32
        h = h.astype(jnp.bfloat16)

    # Output layer: Linear(W, num_bins_padded) on the MXU; bias add in f32.
    o = jnp.dot(h, w3_ref[...], preferred_element_type=jnp.float32) + b3_ref[...]
    o_ref[...] = o.astype(o_ref.dtype)


def prepare_params(params):
    """One-time preprocessing (hoisted out of the forward call):
    pad the output layer to a lane-dense multiple of 128 (zero columns) and
    pre-cast the MXU weight operands to bfloat16."""
    w3t, b3 = params["w3t"], params["b3"]
    num_bins = w3t.shape[1]
    n_pad = _round_up(num_bins, 128)
    if n_pad != num_bins:
        w3t = jnp.pad(w3t, ((0, 0), (0, n_pad - num_bins)))
        b3 = jnp.pad(b3, ((0, 0), (0, n_pad - num_bins)))
    return dict(
        w1t=params["w1t"], b1=params["b1"],
        w2t_bf=params["w2t"].astype(jnp.bfloat16), b2=params["b2"],
        w3t_bf=w3t.astype(jnp.bfloat16), b3p=b3,
        num_bins=num_bins,
    )


def hlgauss_forward(x, prepared, *, max_tile_b=4096, out_dtype=jnp.float32,
                    slice_output=True, bf16_epilogue=False):
    """x: (B, 1) f32.  prepared: output of prepare_params().

    out_dtype=jnp.bfloat16 halves HBM writeback (the dominant traffic) if the
    consumer tolerates it; slice_output=False returns the padded (b_pad, 128)
    slab (bins >= num_bins are exactly zero) and skips the extra copy."""
    w1t, b1 = prepared["w1t"], prepared["b1"]
    w2t_bf, b2 = prepared["w2t_bf"], prepared["b2"]
    w3t_bf, b3p = prepared["w3t_bf"], prepared["b3p"]
    num_bins = prepared["num_bins"]

    B = x.shape[0]
    W = w1t.shape[1]
    n_pad = w3t_bf.shape[1]

    # Batch tiling derived from B (bounded padding waste, megacore-friendly).
    tb = min(_choose_tile_b(B, max_tile=max_tile_b), max(_round_up(B, 8), 8))
    b_pad = _round_up(B, tb)
    if b_pad != B:
        x = jnp.pad(x, ((0, b_pad - B), (0, 0)))
    grid = (b_pad // tb,)

    resident = lambda i: (0, 0)   # weights/biases: same block every step (VMEM-resident)

    out_itemsize = jnp.dtype(out_dtype).itemsize
    weight_bytes = (W * W + W * n_pad) * 2 + (3 * W + n_pad) * 4
    cost = pl.CostEstimate(
        flops=2 * b_pad * W * (W + n_pad) + 4 * b_pad * (2 * W + n_pad),
        transcendentals=0,
        bytes_accessed=b_pad * 4 + b_pad * n_pad * out_itemsize + weight_bytes,
    )

    # Raise the scoped-VMEM limit only when the double-buffered footprint would
    # exceed v5e's 16 MiB default (v6e/v7x default 32 MiB).
    vmem_est = 2 * (tb * n_pad * out_itemsize + tb * 4) + 2 * weight_bytes
    vmem_limit = (min(2 * vmem_est, 100 * 1024 * 1024)
                  if vmem_est > 12 * 1024 * 1024 else None)

    out = pl.pallas_call(
        functools.partial(hlgauss_kernel, bf16_epilogue=bf16_epilogue),
        out_shape=jax.ShapeDtypeStruct((b_pad, n_pad), out_dtype),
        grid=grid,
        in_specs=[
            pl.BlockSpec((tb, 1), lambda i: (i, 0)),     # x tile (double-buffered)
            pl.BlockSpec((1, W), resident),              # w1t
            pl.BlockSpec((1, W), resident),              # b1
            pl.BlockSpec((W, W), resident),              # w2t (bf16)
            pl.BlockSpec((1, W), resident),              # b2
            pl.BlockSpec((W, n_pad), resident),          # w3t (bf16, padded)
            pl.BlockSpec((1, n_pad), resident),          # b3 (padded with zeros)
        ],
        out_specs=pl.BlockSpec((tb, n_pad), lambda i: (i, 0)),
        compiler_params=pltpu.CompilerParams(
            dimension_semantics=("parallel",),           # shard batch axis on v7x megacore
            vmem_limit_bytes=vmem_limit,
        ),
        cost_estimate=cost,
    )(x, w1t, b1, w2t_bf, b2, w3t_bf, b3p)

    if not slice_output:
        return out                       # (b_pad, n_pad) slab; extra bins are zero
    if b_pad == B and n_pad == num_bins:
        return out
    return out[:B, :num_bins]


def init_params(key, width=128, num_bins=100):
    """Deterministic synthetic parameters with nn.Linear-like shapes (transposed)."""
    ks = jax.random.split(key, 6)
    w1t = jax.random.normal(ks[0], (1, width), jnp.float32) * 0.5
    b1 = jax.random.normal(ks[1], (1, width), jnp.float32) * 0.1
    w2t = jax.random.normal(ks[2], (width, width), jnp.float32) * (1.0 / width**0.5)
    b2 = jax.random.normal(ks[3], (1, width), jnp.float32) * 0.1
    w3t = jax.random.normal(ks[4], (width, num_bins), jnp.float32) * (1.0 / width**0.5)
    b3 = jax.random.normal(ks[5], (1, num_bins), jnp.float32) * 0.1
    return dict(w1t=w1t, b1=b1, w2t=w2t, b2=b2, w3t=w3t, b3=b3)


def reference_forward(x, p):
    """Pure-JAX reference matching the kernel's bf16-operand / f32-accum matmuls."""
    h = x * p["w1t"] + p["b1"]
    h = jnp.maximum(h, NEG_SLOPE * h)
    h = jnp.dot(h.astype(jnp.bfloat16), p["w2t"].astype(jnp.bfloat16),
                preferred_element_type=jnp.float32) + p["b2"]
    h = jnp.maximum(h, NEG_SLOPE * h)
    return jnp.dot(h.astype(jnp.bfloat16), p["w3t"].astype(jnp.bfloat16),
                   preferred_element_type=jnp.float32) + p["b3"]


if __name__ == "__main__":
    key = jax.random.PRNGKey(0)
    k_x, k_p = jax.random.split(key)

    batch, width, num_bins = 8, 128, 100   # small shapes (module default width=1024)
    x = jax.random.normal(k_x, (batch, 1), jnp.float32)
    params = init_params(k_p, width=width, num_bins=num_bins)

    prepared = prepare_params(params)      # one-time: pad + bf16-cast weights
    out = hlgauss_forward(x, prepared)
    out = jax.block_until_ready(out)

    ref = reference_forward(x, params)
    assert out.shape == (batch, num_bins)
    assert jnp.allclose(out, ref, atol=2e-3, rtol=2e-3)

    print("KERNEL_OK")
</pallas_src>

<mosaic_0001>
module attributes {stable_mosaic.version = 11 : i64} {
  func.func @hlgauss_kernel(%arg0: i32, %arg1: memref<8x1xf32, #tpu.memory_space<vmem>>, %arg2: memref<1x128xf32, #tpu.memory_space<vmem>>, %arg3: memref<1x128xf32, #tpu.memory_space<vmem>>, %arg4: memref<128x128xbf16, #tpu.memory_space<vmem>>, %arg5: memref<1x128xf32, #tpu.memory_space<vmem>>, %arg6: memref<128x128xbf16, #tpu.memory_space<vmem>>, %arg7: memref<1x128xf32, #tpu.memory_space<vmem>>, %arg8: memref<8x128xf32, #tpu.memory_space<vmem>>) attributes {dimension_semantics = [#tpu.dimension_semantics<parallel>], iteration_bounds = array<i64: 1>, scalar_prefetch = 0 : i64, scratch_operands = 0 : i64, tpu.core_type = #tpu.core_type<tc>, window_params = [{transform_indices = @transform_0, window_bounds = array<i64: 8, 1>}, {pipeline_mode = #tpu.pipeline_mode<synchronous>, transform_indices = @transform_1, window_bounds = array<i64: 1, 128>}, {pipeline_mode = #tpu.pipeline_mode<synchronous>, transform_indices = @transform_2, window_bounds = array<i64: 1, 128>}, {pipeline_mode = #tpu.pipeline_mode<synchronous>, transform_indices = @transform_3, window_bounds = array<i64: 128, 128>}, {pipeline_mode = #tpu.pipeline_mode<synchronous>, transform_indices = @transform_4, window_bounds = array<i64: 1, 128>}, {pipeline_mode = #tpu.pipeline_mode<synchronous>, transform_indices = @transform_5, window_bounds = array<i64: 128, 128>}, {pipeline_mode = #tpu.pipeline_mode<synchronous>, transform_indices = @transform_6, window_bounds = array<i64: 1, 128>}, {transform_indices = @transform_7, window_bounds = array<i64: 8, 128>}]} {
    %c0 = arith.constant 0 : index
    %c0_0 = arith.constant 0 : index
    %0 = vector.load %arg1[%c0, %c0_0] : memref<8x1xf32, #tpu.memory_space<vmem>>, vector<8x1xf32>
    %c0_1 = arith.constant 0 : index
    %c0_2 = arith.constant 0 : index
    %1 = vector.load %arg2[%c0_1, %c0_2] : memref<1x128xf32, #tpu.memory_space<vmem>>, vector<1x128xf32>
    %2 = vector.broadcast %0 : vector<8x1xf32> to vector<8x128xf32>
    %3 = vector.broadcast %1 : vector<1x128xf32> to vector<8x128xf32>
    %4 = arith.mulf %2, %3 : vector<8x128xf32>
    %c0_3 = arith.constant 0 : index
    %c0_4 = arith.constant 0 : index
    %5 = vector.load %arg3[%c0_3, %c0_4] : memref<1x128xf32, #tpu.memory_space<vmem>>, vector<1x128xf32>
    %6 = vector.broadcast %5 : vector<1x128xf32> to vector<8x128xf32>
    %7 = arith.addf %4, %6 : vector<8x128xf32>
    %cst = arith.constant 0.00999999977 : f32
    %8 = vector.broadcast %cst : f32 to vector<8x128xf32>
    %9 = arith.mulf %8, %7 : vector<8x128xf32>
    %10 = arith.maximumf %7, %9 : vector<8x128xf32>
    %11 = arith.truncf %10 : vector<8x128xf32> to vector<8x128xbf16>
    %c0_5 = arith.constant 0 : index
    %c0_6 = arith.constant 0 : index
    %12 = vector.load %arg4[%c0_5, %c0_6] : memref<128x128xbf16, #tpu.memory_space<vmem>>, vector<128x128xbf16>
    %cst_7 = arith.constant dense<0.000000e+00> : vector<8x128xf32>
    %13 = tpu.matmul %11, %12, %cst_7 {dimension_numbers = #tpu.dot_dimension_numbers<[1], [0], [0], [1], [0, 0, 1, 1], [], []>} : vector<8x128xbf16>, vector<128x128xbf16>, vector<8x128xf32> -> vector<8x128xf32>
    %c0_8 = arith.constant 0 : index
    %c0_9 = arith.constant 0 : index
    %14 = vector.load %arg5[%c0_8, %c0_9] : memref<1x128xf32, #tpu.memory_space<vmem>>, vector<1x128xf32>
    %15 = vector.broadcast %14 : vector<1x128xf32> to vector<8x128xf32>
    %16 = arith.addf %13, %15 : vector<8x128xf32>
    %cst_10 = arith.constant 0.00999999977 : f32
    %17 = vector.broadcast %cst_10 : f32 to vector<8x128xf32>
    %18 = arith.mulf %17, %16 : vector<8x128xf32>
    %19 = arith.maximumf %16, %18 : vector<8x128xf32>
    %20 = arith.truncf %19 : vector<8x128xf32> to vector<8x128xbf16>
    %c0_11 = arith.constant 0 : index
    %c0_12 = arith.constant 0 : index
    %21 = vector.load %arg6[%c0_11, %c0_12] : memref<128x128xbf16, #tpu.memory_space<vmem>>, vector<128x128xbf16>
    %cst_13 = arith.constant dense<0.000000e+00> : vector<8x128xf32>
    %22 = tpu.matmul %20, %21, %cst_13 {dimension_numbers = #tpu.dot_dimension_numbers<[1], [0], [0], [1], [0, 0, 1, 1], [], []>} : vector<8x128xbf16>, vector<128x128xbf16>, vector<8x128xf32> -> vector<8x128xf32>
    %c0_14 = arith.constant 0 : index
    %c0_15 = arith.constant 0 : index
    %23 = vector.load %arg7[%c0_14, %c0_15] : memref<1x128xf32, #tpu.memory_space<vmem>>, vector<1x128xf32>
    %24 = vector.broadcast %23 : vector<1x128xf32> to vector<8x128xf32>
    %25 = arith.addf %22, %24 : vector<8x128xf32>
    %c0_16 = arith.constant 0 : index
    %c0_17 = arith.constant 0 : index
    %26 = vector.load %arg8[%c0_16, %c0_17] : memref<8x128xf32, #tpu.memory_space<vmem>>, vector<8x128xf32>
    tpu.vector_store %arg8[%c0_16, %c0_17], %25 {strides = array<i32>} : memref<8x128xf32, #tpu.memory_space<vmem>>, vector<8x128xf32>,
    return
  }
  func.func @transform_0(%arg0: i32) -> (i32, i32) {
    %c0_i32 = arith.constant 0 : i32
    %c0_i32_0 = arith.constant 0 : i32
    return %arg0, %c0_i32 : i32, i32
  }
  func.func @transform_1(%arg0: i32) -> (i32, i32) {
    %c0_i32 = arith.constant 0 : i32
    %c0_i32_0 = arith.constant 0 : i32
    %c0_i32_1 = arith.constant 0 : i32
    return %c0_i32, %c0_i32_0 : i32, i32
  }
  func.func @transform_2(%arg0: i32) -> (i32, i32) {
    %c0_i32 = arith.constant 0 : i32
    %c0_i32_0 = arith.constant 0 : i32
    %c0_i32_1 = arith.constant 0 : i32
    return %c0_i32, %c0_i32_0 : i32, i32
  }
  func.func @transform_3(%arg0: i32) -> (i32, i32) {
    %c0_i32 = arith.constant 0 : i32
    %c0_i32_0 = arith.constant 0 : i32
    %c0_i32_1 = arith.constant 0 : i32
    return %c0_i32, %c0_i32_0 : i32, i32
  }
  func.func @transform_4(%arg0: i32) -> (i32, i32) {
    %c0_i32 = arith.constant 0 : i32
    %c0_i32_0 = arith.constant 0 : i32
    %c0_i32_1 = arith.constant 0 : i32
    return %c0_i32, %c0_i32_0 : i32, i32
  }
  func.func @transform_5(%arg0: i32) -> (i32, i32) {
    %c0_i32 = arith.constant 0 : i32
    %c0_i32_0 = arith.constant 0 : i32
    %c0_i32_1 = arith.constant 0 : i32
    return %c0_i32, %c0_i32_0 : i32, i32
  }
  func.func @transform_6(%arg0: i32) -> (i32, i32) {
    %c0_i32 = arith.constant 0 : i32
    %c0_i32_0 = arith.constant 0 : i32
    %c0_i32_1 = arith.constant 0 : i32
    return %c0_i32, %c0_i32_0 : i32, i32
  }
  func.func @transform_7(%arg0: i32) -> (i32, i32) {
    %c0_i32 = arith.constant 0 : i32
    %c0_i32_0 = arith.constant 0 : i32
    return %arg0, %c0_i32 : i32, i32
  }
}

</mosaic_0001>

<llo_original>
// kernel: tpu_custom_call.1
$region0: #{tpu_custom_call.1}
  #allocation0 [shape = 'u32[]', space=smem, size = 0x4, offset = 0x4, fixed_abs, tag = 'smem constant byte address 0x4 - core index']
  #allocation1 [shape = 'u32[144,128]{1,0:T(1,128)}', space=vmem, size = 0x12000, scoped, tag = 'internal scratch']
  %s0 = inlined_call_operand.vmem [shape: f32[8,1], index: 0, kind: input, shape index: {}]
  %s1 = inlined_call_operand.vmem [shape: f32[1,128], index: 1, kind: input, shape index: {}]
  %s2 = inlined_call_operand.vmem [shape: f32[1,128], index: 2, kind: input, shape index: {}]
  %s3 = inlined_call_operand.hbm [shape: bf16[128,128], index: 3, kind: input, shape index: {}]
  %s4 = inlined_call_operand.vmem [shape: f32[1,128], index: 4, kind: input, shape index: {}]
  %s5 = inlined_call_operand.hbm [shape: bf16[128,128], index: 5, kind: input, shape index: {}]
  %s6 = inlined_call_operand.vmem [shape: f32[1,128], index: 6, kind: input, shape index: {}]
  %s7 = inlined_call_operand.hbm [shape: f32[8,128], index: 7, kind: output, shape index: {}]
  %s8 = sld [smem:[#allocation0]]
  $region46: #{tpu_custom_call.1} parent=0
    _
  %s10 = ssub.s32 1, %s8
  %s11 = scalar_select 0, %s10, %s8
  $region1: #{tpu_custom_call.1} parent=0
    #allocation2 [shape = 'u8[32768]{0}', space=vmem, size = 0x8000, scoped, tag = 'input window, operand 3, single buffered']
    #allocation3 [shape = 's32[1]{0}', space=sflag, size = 0x4, scoped, tag = 'scoped memory for tpu_custom_call.1']
    #allocation4 [shape = 's32[1]{0}', space=sflag, size = 0x4, scoped, tag = 'scoped memory for tpu_custom_call.1']
    #allocation5 [shape = 'u8[32768]{0}', space=vmem, size = 0x8000, scoped, tag = 'input window, operand 5, single buffered']
    #allocation6 [shape = 's32[1]{0}', space=sflag, size = 0x4, scoped, tag = 'scoped memory for tpu_custom_call.1']
    #allocation7 [shape = 'u8[4096]{0}', space=vmem, size = 0x1000, scoped, tag = 'output window, operand 0, single buffered']
    %12 = vsyncpa [#allocation3], 0
    %13 = vsyncpa [#allocation6], 0
    %14 = vsyncpa [#allocation4], 0
    // Predicated region
    $region2: #{tpu_custom_call.1} parent=1 // pred_check
      _
    $region3: #{tpu_custom_call.1} parent=1 // pred_check_branch
      %16 = sbr.rel (0) target = $region5
    $region4: #{tpu_custom_call.1} parent=1 // pred_region
      _
    $region5: #{tpu_custom_call.1} parent=1 // pred_fallthru
      _
    // Predicated region
    $region6: #{tpu_custom_call.1} parent=1 // pred_check
      _
    $region7: #{tpu_custom_call.1} parent=1 // pred_check_branch
      %18 = sbr.rel (0) target = $region9
    $region8: #{tpu_custom_call.1} parent=1 // pred_region
      _
    $region9: #{tpu_custom_call.1} parent=1 // pred_fallthru
      _
    // Predicated region
    $region10: #{tpu_custom_call.1} parent=1 // pred_check
      _
    $region11: #{tpu_custom_call.1} parent=1 // pred_check_branch
      %20 = sbr.rel (0) target = $region13
    $region12: #{tpu_custom_call.1} parent=1 // pred_region
      _
    $region13: #{tpu_custom_call.1} parent=1 // pred_fallthru
      _
    // Predicated region
    $region14: #{tpu_custom_call.1} parent=1 // pred_check
      _
    $region15: #{tpu_custom_call.1} parent=1 // pred_check_branch
      %22 = sbr.rel (0) target = $region17
    $region16: #{tpu_custom_call.1} parent=1 // pred_region
      %s24 = ssub.s32 1024, 1024
      %25 = vsyncadd [#allocation3], %s24
      %s26 = sshll.u32 [#allocation2], 4
      %s27 = int_to_ptr.vmem [resolvable:$true] %s26
      %32 = dma.hbm_to_vmem [thread:$0]  %s3, 1024, %s27, [#allocation3], 64, 64, 4
    $region17: #{tpu_custom_call.1} parent=1 // pred_fallthru
      _
    // Predicated region
    $region18: #{tpu_custom_call.1} parent=1 // pred_check
      _
    $region19: #{tpu_custom_call.1} parent=1 // pred_check_branch
      %34 = sbr.rel (0) target = $region21
    $region20: #{tpu_custom_call.1} parent=1 // pred_region
      _
    $region21: #{tpu_custom_call.1} parent=1 // pred_fallthru
      _
    // Predicated region
    $region22: #{tpu_custom_call.1} parent=1 // pred_check
      _
    $region23: #{tpu_custom_call.1} parent=1 // pred_check_branch
      %36 = sbr.rel (0) target = $region25
    $region24: #{tpu_custom_call.1} parent=1 // pred_region
      %s38 = ssub.s32 1024, 1024
      %39 = vsyncadd [#allocation6], %s38
      %s40 = sshll.u32 [#allocation5], 4
      %s41 = int_to_ptr.vmem [resolvable:$true] %s40
      %46 = dma.hbm_to_vmem [thread:$0]  %s5, 1024, %s41, [#allocation6], 64, 64, 4
    $region25: #{tpu_custom_call.1} parent=1 // pred_fallthru
      _
    // Predicated region
    $region26: #{tpu_custom_call.1} parent=1 // pred_check
      _
    $region27: #{tpu_custom_call.1} parent=1 // pred_check_branch
      %48 = sbr.rel (0) target = $region29
    $region28: #{tpu_custom_call.1} parent=1 // pred_region
      _
    $region29: #{tpu_custom_call.1} parent=1 // pred_fallthru
      _
    // Predicated region
    $region30: #{tpu_custom_call.1} parent=1 // pred_check
      _
    $region31: #{tpu_custom_call.1} parent=1 // pred_check_branch
      %50 = sbr.rel (0) target = $region33
    $region32: #{tpu_custom_call.1} parent=1 // pred_region
      %51 = dma.done [#allocation3], 1024
    $region33: #{tpu_custom_call.1} parent=1 // pred_fallthru
      _
    // Predicated region
    $region34: #{tpu_custom_call.1} parent=1 // pred_check
      _
    $region35: #{tpu_custom_call.1} parent=1 // pred_check_branch
      %53 = sbr.rel (0) target = $region37
    $region36: #{tpu_custom_call.1} parent=1 // pred_region
      %54 = dma.done [#allocation6], 1024
    $region37: #{tpu_custom_call.1} parent=1 // pred_fallthru
      _
    %v56 = vld [vmem:[%s0] sm:$0xff]
    %v57 = vld [vmem:[%s1] sm:$0x1]
    %59 = vset.pattern.permute.xlu0 0
    %60 = vperm.xlu0 %59, %v56
    %v61 = vpop.permute.xlu0 %60
    %v64 = vlaneseq
    %v65 = vshrl.u32 %v64, 7
    %v66 = vsub.s32 0, %v65
    %v67 = vrot.slane %v57, %v66
    %v69 = vmul.f32 %v61, %v67
    %v70 = vld [vmem:[%s2] sm:$0x1]
    %v72 = vlaneseq
    %v73 = vshrl.u32 %v72, 7
    %v74 = vsub.s32 0, %v73
    %v75 = vrot.slane %v70, %v74
    %v77 = vadd.f32 %v69, %v75
    %v78 = vmul.f32 %v77, 0.01
    %v79 = vmax.f32 %v77, %v78
    %v80 = vpack.c.bf16 %v79, %v79
    %v81 = vld [vmem:[#allocation2] sm:$0xf]
    %v82 = vld [vmem:[#allocation2 + $0x4] sm:$0xf]
    %v83 = vld [vmem:[#allocation2 + $0x8] sm:$0xf]
    %v84 = vld [vmem:[#allocation2 + $0xc] sm:$0xf]
    %v85 = vld [vmem:[#allocation2 + $0x10] sm:$0xf]
    %v86 = vld [vmem:[#allocation2 + $0x14] sm:$0xf]
    %v87 = vld [vmem:[#allocation2 + $0x18] sm:$0xf]
    %v88 = vld [vmem:[#allocation2 + $0x1c] sm:$0xf]
    %v89 = vld [vmem:[#allocation2 + $0x20] sm:$0xf]
    %v90 = vld [vmem:[#allocation2 + $0x24] sm:$0xf]
    %v91 = vld [vmem:[#allocation2 + $0x28] sm:$0xf]
    %v92 = vld [vmem:[#allocation2 + $0x2c] sm:$0xf]
    %v93 = vld [vmem:[#allocation2 + $0x30] sm:$0xf]
    %v94 = vld [vmem:[#allocation2 + $0x34] sm:$0xf]
    %v95 = vld [vmem:[#allocation2 + $0x38] sm:$0xf]
    %v96 = vld [vmem:[#allocation2 + $0x3c] sm:$0xf]
    %v97 = vld [vmem:[%s4] sm:$0x1]
    %v99 = vlaneseq
    %v100 = vshrl.u32 %v99, 7
    %v101 = vsub.s32 0, %v100
    %v102 = vrot.slane %v97, %v101
    %v120 = vunpack.c.l.b16 %v81
    %v121 = vunpack.c.l.b16 %v82
    %v122 = vunpack.c.l.b16 %v83
    %v123 = vunpack.c.l.b16 %v84
    %v124 = vunpack.c.l.b16 %v85
    %v125 = vunpack.c.l.b16 %v86
    %v126 = vunpack.c.l.b16 %v87
    %v127 = vunpack.c.l.b16 %v88
    %v128 = vunpack.c.l.b16 %v89
    %v129 = vunpack.c.l.b16 %v90
    %v130 = vunpack.c.l.b16 %v91
    %v131 = vunpack.c.l.b16 %v92
    %v132 = vunpack.c.l.b16 %v93
    %v133 = vunpack.c.l.b16 %v94
    %v134 = vunpack.c.l.b16 %v95
    %v135 = vunpack.c.l.b16 %v96
    %v136 = vpack.c.b16 %v121, %v120
    %v137 = vpack.c.b16 %v123, %v122
    %v138 = vpack.c.b16 %v125, %v124
    %v139 = vpack.c.b16 %v127, %v126
    %v140 = vpack.c.b16 %v129, %v128
    %v141 = vpack.c.b16 %v131, %v130
    %v142 = vpack.c.b16 %v133, %v132
    %v143 = vpack.c.b16 %v135, %v134
    %152 = vmatprep.subr.bf16.mxu0 0
    %153 = vmatpush1.bf16.msra.mxu0 %v136
    %154 = vmatprep.subr.bf16.mxu0 0
    %155 = vmatpush1.bf16.msra.mxu0 %v137
    %156 = vmatprep.subr.bf16.mxu0 0
    %157 = vmatpush1.bf16.msra.mxu0 %v138
    %158 = vmatprep.subr.bf16.mxu0 0
    %159 = vmatpush1.bf16.msra.mxu0 %v139
    %160 = vmatprep.subr.bf16.mxu0 0
    %161 = vmatpush1.bf16.msra.mxu0 %v140
    %162 = vmatprep.subr.bf16.mxu0 0
    %163 = vmatpush1.bf16.msra.mxu0 %v141
    %164 = vmatprep.subr.bf16.mxu0 0
    %165 = vmatpush1.bf16.msra.mxu0 %v142
    %166 = vmatprep.subr.bf16.mxu0 0
    %167 = vmatpush1.bf16.msra.mxu0 %v143
    %168 = vmatprep.subr.bf16.mxu0 0
    %169 = vmatpush1.bf16.msra.mxu0 0
    %170 = vmatprep.subr.bf16.mxu0 0
    %171 = vmatpush1.bf16.msra.mxu0 0
    %172 = vmatprep.subr.bf16.mxu0 0
    %173 = vmatpush1.bf16.msra.mxu0 0
    %174 = vmatprep.subr.bf16.mxu0 0
    %175 = vmatpush1.bf16.msra.mxu0 0
    %176 = vmatprep.subr.bf16.mxu0 0
    %177 = vmatpush1.bf16.msra.mxu0 0
    %178 = vmatprep.subr.bf16.mxu0 0
    %179 = vmatpush1.bf16.msra.mxu0 0
    %180 = vmatprep.subr.bf16.mxu0 0
    %181 = vmatpush1.bf16.msra.mxu0 0
    %182 = vmatprep.subr.bf16.mxu0 0
    %183 = vmatpush1.bf16.msra.mxu0 0
    %184 = vmatprep.mubr.bf16.mxu0 0
    %185 = vmatmul.mubr.bf16.gmra.mrb[0].mxu0 %v80
    %v186 = vpop.f32.mrb[0].mxu0
    %v187 = vadd.f32 %v102, %v186
    %v188 = vpop.f32.mrb[0].mxu0
    %v189 = vpop.f32.mrb[0].mxu0
    %v190 = vpop.f32.mrb[0].mxu0
    %191 = vdwg.mxu0
    %v192 = vmul.f32 %v187, 0.01
    %v193 = vmax.f32 %v187, %v192
    %v194 = vpack.c.bf16 %v193, %v193
    %v195 = vld [vmem:[#allocation5] sm:$0xf]
    %v196 = vld [vmem:[#allocation5 + $0x4] sm:$0xf]
    %v197 = vld [vmem:[#allocation5 + $0x8] sm:$0xf]
    %v198 = vld [vmem:[#allocation5 + $0xc] sm:$0xf]
    %v199 = vld [vmem:[#allocation5 + $0x10] sm:$0xf]
    %v200 = vld [vmem:[#allocation5 + $0x14] sm:$0xf]
    %v201 = vld [vmem:[#allocation5 + $0x18] sm:$0xf]
    %v202 = vld [vmem:[#allocation5 + $0x1c] sm:$0xf]
    %v203 = vld [vmem:[#allocation5 + $0x20] sm:$0xf]
    %v204 = vld [vmem:[#allocation5 + $0x24] sm:$0xf]
    %v205 = vld [vmem:[#allocation5 + $0x28] sm:$0xf]
    %v206 = vld [vmem:[#allocation5 + $0x2c] sm:$0xf]
    %v207 = vld [vmem:[#allocation5 + $0x30] sm:$0xf]
    %v208 = vld [vmem:[#allocation5 + $0x34] sm:$0xf]
    %v209 = vld [vmem:[#allocation5 + $0x38] sm:$0xf]
    %v210 = vld [vmem:[#allocation5 + $0x3c] sm:$0xf]
    %v211 = vld [vmem:[%s6] sm:$0x1]
    %v213 = vlaneseq
    %v214 = vshrl.u32 %v213, 7
    %v215 = vsub.s32 0, %v214
    %v216 = vrot.slane %v211, %v215
    %v234 = vunpack.c.l.b16 %v195
    %v235 = vunpack.c.l.b16 %v196
    %v236 = vunpack.c.l.b16 %v197
    %v237 = vunpack.c.l.b16 %v198
    %v238 = vunpack.c.l.b16 %v199
    %v239 = vunpack.c.l.b16 %v200
    %v240 = vunpack.c.l.b16 %v201
    %v241 = vunpack.c.l.b16 %v202
    %v242 = vunpack.c.l.b16 %v203
    %v243 = vunpack.c.l.b16 %v204
    %v244 = vunpack.c.l.b16 %v205
    %v245 = vunpack.c.l.b16 %v206
    %v246 = vunpack.c.l.b16 %v207
    %v247 = vunpack.c.l.b16 %v208
    %v248 = vunpack.c.l.b16 %v209
    %v249 = vunpack.c.l.b16 %v210
    %v250 = vpack.c.b16 %v235, %v234
    %v251 = vpack.c.b16 %v237, %v236
    %v252 = vpack.c.b16 %v239, %v238
    %v253 = vpack.c.b16 %v241, %v240
    %v254 = vpack.c.b16 %v243, %v242
    %v255 = vpack.c.b16 %v245, %v244
    %v256 = vpack.c.b16 %v247, %v246
    %v257 = vpack.c.b16 %v249, %v248
    %266 = vmatprep.subr.bf16.mxu0 0
    %267 = vmatpush1.bf16.msra.mxu0 %v250
    %268 = vmatprep.subr.bf16.mxu0 0
    %269 = vmatpush1.bf16.msra.mxu0 %v251
    %270 = vmatprep.subr.bf16.mxu0 0
    %271 = vmatpush1.bf16.msra.mxu0 %v252
    %272 = vmatprep.subr.bf16.mxu0 0
    %273 = vmatpush1.bf16.msra.mxu0 %v253
    %274 = vmatprep.subr.bf16.mxu0 0
    %275 = vmatpush1.bf16.msra.mxu0 %v254
    %276 = vmatprep.subr.bf16.mxu0 0
    %277 = vmatpush1.bf16.msra.mxu0 %v255
    %278 = vmatprep.subr.bf16.mxu0 0
    %279 = vmatpush1.bf16.msra.mxu0 %v256
    %280 = vmatprep.subr.bf16.mxu0 0
    %281 = vmatpush1.bf16.msra.mxu0 %v257
    %282 = vmatprep.subr.bf16.mxu0 0
    %283 = vmatpush1.bf16.msra.mxu0 0
    %284 = vmatprep.subr.bf16.mxu0 0
    %285 = vmatpush1.bf16.msra.mxu0 0
    %286 = vmatprep.subr.bf16.mxu0 0
    %287 = vmatpush1.bf16.msra.mxu0 0
    %288 = vmatprep.subr.bf16.mxu0 0
    %289 = vmatpush1.bf16.msra.mxu0 0
    %290 = vmatprep.subr.bf16.mxu0 0
    %291 = vmatpush1.bf16.msra.mxu0 0
    %292 = vmatprep.subr.bf16.mxu0 0
    %293 = vmatpush1.bf16.msra.mxu0 0
    %294 = vmatprep.subr.bf16.mxu0 0
    %295 = vmatpush1.bf16.msra.mxu0 0
    %296 = vmatprep.subr.bf16.mxu0 0
    %297 = vmatpush1.bf16.msra.mxu0 0
    %298 = vmatprep.mubr.bf16.mxu0 0
    %299 = vmatmul.mubr.bf16.gmra.mrb[0].mxu0 %v194
    %v300 = vpop.f32.mrb[0].mxu0
    %v301 = vadd.f32 %v216, %v300
    %v302 = vpop.f32.mrb[0].mxu0
    %v303 = vpop.f32.mrb[0].mxu0
    %v304 = vpop.f32.mrb[0].mxu0
    %305 = vdwg.mxu0
    %306 = vst [vmem:[#allocation7] sm:$0xff] %v301
    // Predicated region
    $region38: #{tpu_custom_call.1} parent=1 // pred_check
      _
    $region39: #{tpu_custom_call.1} parent=1 // pred_check_branch
      %308 = sbr.rel (0) target = $region41
    $region40: #{tpu_custom_call.1} parent=1 // pred_region
      %s310 = ssub.s32 128, 128
      %311 = vsyncadd [#allocation4], %s310
      %s313 = sshll.u32 [#allocation7], 4
      %s314 = int_to_ptr.vmem [resolvable:$true] %s313
      %316 = dma.vmem_to_hbm [thread:$0]  %s314, 128, %s7, [#allocation4]
    $region41: #{tpu_custom_call.1} parent=1 // pred_fallthru
      _
    // Predicated region
    $region42: #{tpu_custom_call.1} parent=1 // pred_check
      _
    $region43: #{tpu_custom_call.1} parent=1 // pred_check_branch
      %318 = sbr.rel (0) target = $region45
    $region44: #{tpu_custom_call.1} parent=1 // pred_region
      %319 = dma.done [#allocation4], 128
    $region45: #{tpu_custom_call.1} parent=1 // pred_fallthru
      _
    %320 = vsyncpa [#allocation3], 1
    %321 = vsyncpa [#allocation6], 1
    %322 = vsyncpa [#allocation4], 1

</llo_original>
